<compile_context>
chip_gen: v7x
topology: tpu7x:2x2x1
jax: 0.10.0
libtpu: 0.0.40
codegen_flags: <defaults>
</compile_context>

<pallas_src>
import functools

import jax
import jax.numpy as jnp
from jax.experimental import pallas as pl
from jax.experimental.pallas import tpu as pltpu

NEG_SLOPE = 0.2                     # DGL GATConv default negative_slope
NEG_INF = -1e9
VMEM_LIMIT = 48 * 1024 * 1024       # below v7x's 64 MiB physical VMEM


def _round_up(x, m):
    return ((x + m - 1) // m) * m


# ----------------------------- kernels --------------------------------------
def proj_kernel(x_ref, w_ref, o_ref):
    """o = x @ [W | W_al | W_ar]  (bf16 MXU inputs, f32 accumulation)."""
    o_ref[...] = jnp.dot(x_ref[...].astype(jnp.bfloat16), w_ref[...],
                         preferred_element_type=jnp.float32)


def gat_attn_kernel(adj_ref, er_ref, elt_ref, z_ref, o_ref, *,
                    num_heads, head_dim, apply_elu, mean_heads):
    """One destination-row tile of a dense multi-head GAT layer."""
    # Additive edge bias (0 on edges, -1e9 elsewhere), hoisted out of the
    # per-head loop.  adj tile is int8.
    bias = jnp.where(adj_ref[...] > 0, jnp.float32(0.0), jnp.float32(NEG_INF))
    er = er_ref[...]                 # (T, H)  destination-side attention terms
    el_t = elt_ref[...]              # (H, N)  source-side terms, pre-transposed
    inv_h = jnp.float32(1.0 / num_heads)

    outs = []
    for h in range(num_heads):
        e = er[:, h:h + 1] + el_t[h:h + 1, :]               # (T, N)
        e = jnp.where(e > 0, e, NEG_SLOPE * e)              # LeakyReLU
        e = e + bias                                        # mask non-edges
        e = e - jnp.max(e, axis=-1, keepdims=True)          # stable softmax
        p = jnp.exp(e)                                      # non-edges -> 0
        inv = pl.reciprocal(jnp.sum(p, axis=-1, keepdims=True), approx=True)
        alpha = (p * inv).astype(jnp.bfloat16)              # (T, N)
        zh = z_ref[:, h * head_dim:(h + 1) * head_dim]      # (N, D) bf16
        outs.append(jnp.dot(alpha, zh, preferred_element_type=jnp.float32))

    if mean_heads:
        acc = outs[0]
        for oh in outs[1:]:
            acc = acc + oh
        res = acc * inv_h                                   # (T, D) head mean
    else:
        res = jnp.concatenate(outs, axis=-1)                # (T, H*D) flatten

    if apply_elu:
        res = jnp.where(res > 0, res, jnp.exp(res) - 1.0)   # F.elu (alpha=1)

    o_ref[...] = res.astype(o_ref.dtype)


# ----------------------------- wrappers --------------------------------------
def _fold_attn_proj(w, a_l, a_r, num_heads, head_dim):
    """Fold attention vectors into the feature matmul: [W | W.a_l | W.a_r]."""
    f_in = w.shape[0]
    w3 = w.reshape(f_in, num_heads, head_dim)
    w_al = jnp.einsum("fhd,hd->fh", w3, a_l)     # el = x @ w_al
    w_ar = jnp.einsum("fhd,hd->fh", w3, a_r)     # er = x @ w_ar
    return jnp.concatenate([w, w_al, w_ar], axis=1).astype(jnp.bfloat16)


def _gat_layer_pallas(x, adj_i8, w_cat, num_heads, head_dim, *,
                      tile_n, apply_elu, mean_heads):
    n_pad, f_in = x.shape
    hd = num_heads * head_dim
    k = hd + 2 * num_heads
    grid = (n_pad // tile_n,)
    cparams = pltpu.CompilerParams(dimension_semantics=("parallel",),
                                   vmem_limit_bytes=VMEM_LIMIT)

    # 1) projection: z | el | er in one row-tiled MXU matmul.
    zcat = pl.pallas_call(
        proj_kernel,
        out_shape=jax.ShapeDtypeStruct((n_pad, k), jnp.float32),
        grid=grid,
        in_specs=[pl.BlockSpec((tile_n, f_in), lambda i: (i, 0)),
                  pl.BlockSpec((f_in, k), lambda i: (0, 0))],
        out_specs=pl.BlockSpec((tile_n, k), lambda i: (i, 0)),
        compiler_params=cparams,
    )(x, w_cat)

    z = zcat[:, :hd].astype(jnp.bfloat16)            # (N, H*D) for alpha @ z
    el_t = zcat[:, hd:hd + num_heads].T              # (H, N): one transpose, all heads
    er = zcat[:, hd + num_heads:]                    # (N, H)

    out_dim = head_dim if mean_heads else hd
    kernel = functools.partial(gat_attn_kernel, num_heads=num_heads,
                               head_dim=head_dim, apply_elu=apply_elu,
                               mean_heads=mean_heads)

    # 2) attention: grid over destination-row tiles of the int8 adjacency.
    return pl.pallas_call(
        kernel,
        out_shape=jax.ShapeDtypeStruct((n_pad, out_dim), jnp.float32),
        grid=grid,
        in_specs=[pl.BlockSpec((tile_n, n_pad), lambda i: (i, 0)),       # adj rows
                  pl.BlockSpec((tile_n, num_heads), lambda i: (i, 0)),   # er tile
                  pl.BlockSpec((num_heads, n_pad), lambda i: (0, 0)),    # el^T (resident)
                  pl.BlockSpec((n_pad, hd), lambda i: (0, 0))],          # z (resident)
        out_specs=pl.BlockSpec((tile_n, out_dim), lambda i: (i, 0)),
        compiler_params=cparams,
    )(adj_i8, er, el_t, z)


def net_forward(features, adj, params, *, h1, d1, h2, d2, tile_n=128):
    n = features.shape[0]
    tile_n = _round_up(max(8, min(tile_n, n)), 8)
    n_pad = _round_up(n, tile_n)

    x = jnp.pad(features.astype(jnp.float32), ((0, n_pad - n), (0, 0)))
    adj_i8 = jnp.pad((adj > 0).astype(jnp.int8),
                     ((0, n_pad - n), (0, n_pad - n)))

    w_cat1 = _fold_attn_proj(params["w1"], params["al1"], params["ar1"], h1, d1)
    w_cat2 = _fold_attn_proj(params["w2"], params["al2"], params["ar2"], h2, d2)

    # layer 1: GATConv -> flatten heads -> ELU (ELU fused into the kernel)
    h = _gat_layer_pallas(x, adj_i8, w_cat1, h1, d1,
                          tile_n=tile_n, apply_elu=True, mean_heads=False)
    # layer 2: GATConv -> mean over heads (mean fused into the kernel)
    out = _gat_layer_pallas(h, adj_i8, w_cat2, h2, d2,
                            tile_n=tile_n, apply_elu=False, mean_heads=True)
    return out[:n]


# ----- pure-JAX f32 reference (faithful to the original module semantics) ----
def _ref_gat_layer(x, adj, w, al, ar, H, D):
    z = x @ w
    outs = []
    for h in range(H):
        zh = z[:, h * D:(h + 1) * D]
        el = (zh * al[h]).sum(-1, keepdims=True)
        er = (zh * ar[h]).sum(-1, keepdims=True)
        e = er + el.T
        e = jnp.where(e > 0, e, NEG_SLOPE * e)
        e = jnp.where(adj > 0, e, NEG_INF)
        e = e - e.max(-1, keepdims=True)
        p = jnp.exp(e) * (adj > 0)
        alpha = p / p.sum(-1, keepdims=True)
        outs.append(alpha @ zh)
    return outs


def _ref_forward(x, adj, params, h1, d1, h2, d2):
    hh = jnp.concatenate(
        _ref_gat_layer(x, adj, params["w1"], params["al1"], params["ar1"], h1, d1),
        axis=-1)
    hh = jnp.where(hh > 0, hh, jnp.exp(hh) - 1.0)
    outs = _ref_gat_layer(hh, adj, params["w2"], params["al2"], params["ar2"], h2, d2)
    return sum(outs) / h2


if __name__ == "__main__":
    key = jax.random.PRNGKey(0)
    N, F_IN = 128, 16          # nodes, input feature dim
    H1, D1 = 4, 8              # args.num_heads, hidden units per head
    H2, C = 2, 5               # args.num_out_heads, n_classes = 5
    TILE_N = 32                # destination-row tile -> grid of 4 tiles

    k1, k2, k3, k4, k5, k6, k7, k8 = jax.random.split(key, 8)

    x = jax.random.normal(k1, (N, F_IN), jnp.float32)

    # deterministic sparse graph + self-loops (adj[i, j] = 1 iff edge j -> i)
    adj = (jax.random.uniform(k2, (N, N)) < 0.1).astype(jnp.float32)
    adj = jnp.maximum(adj, jnp.eye(N, dtype=jnp.float32))

    def kaiming_sigmoid(k, shape, fan_in):
        # kaiming_normal_(nonlinearity='sigmoid') -> gain 1, std = 1/sqrt(fan_in)
        return jax.random.normal(k, shape, jnp.float32) / jnp.sqrt(float(fan_in))

    params = {
        "w1":  kaiming_sigmoid(k3, (F_IN, H1 * D1), F_IN),
        "al1": 0.1 * jax.random.normal(k4, (H1, D1), jnp.float32),
        "ar1": 0.1 * jax.random.normal(k5, (H1, D1), jnp.float32),
        "w2":  kaiming_sigmoid(k6, (H1 * D1, H2 * C), H1 * D1),
        "al2": 0.1 * jax.random.normal(k7, (H2, C), jnp.float32),
        "ar2": 0.1 * jax.random.normal(k8, (H2, C), jnp.float32),
    }

    out = net_forward(x, adj, params, h1=H1, d1=D1, h2=H2, d2=C, tile_n=TILE_N)
    out = jax.block_until_ready(out)

    ref = _ref_forward(x, adj, params, H1, D1, H2, C)
    assert out.shape == (N, C)
    # bf16 MXU operands + approx reciprocal vs f32 reference -> loose tolerance
    assert jnp.allclose(out, ref, atol=2e-2, rtol=2e-2), \
        float(jnp.max(jnp.abs(out - ref)))

    print("KERNEL_OK")
</pallas_src>

<mosaic_0001>
module attributes {stable_mosaic.version = 11 : i64} {
  func.func @proj_kernel(%arg0: i32, %arg1: memref<32x16xf32, #tpu.memory_space<vmem>>, %arg2: memref<16x40xbf16, #tpu.memory_space<vmem>>, %arg3: memref<32x40xf32, #tpu.memory_space<vmem>>) attributes {dimension_semantics = [#tpu.dimension_semantics<parallel>], iteration_bounds = array<i64: 4>, scalar_prefetch = 0 : i64, scratch_operands = 0 : i64, tpu.core_type = #tpu.core_type<tc>, window_params = [{transform_indices = @transform_0, window_bounds = array<i64: 32, 16>}, {pipeline_mode = #tpu.pipeline_mode<synchronous>, transform_indices = @transform_1, window_bounds = array<i64: 16, 40>}, {transform_indices = @transform_2, window_bounds = array<i64: 32, 40>}]} {
    %c0 = arith.constant 0 : index
    %c0_0 = arith.constant 0 : index
    %0 = vector.load %arg1[%c0, %c0_0] : memref<32x16xf32, #tpu.memory_space<vmem>>, vector<32x16xf32>
    %1 = arith.truncf %0 : vector<32x16xf32> to vector<32x16xbf16>
    %c0_1 = arith.constant 0 : index
    %c0_2 = arith.constant 0 : index
    %2 = vector.load %arg2[%c0_1, %c0_2] : memref<16x40xbf16, #tpu.memory_space<vmem>>, vector<16x40xbf16>
    %cst = arith.constant dense<0.000000e+00> : vector<32x40xf32>
    %3 = tpu.matmul %1, %2, %cst {dimension_numbers = #tpu.dot_dimension_numbers<[1], [0], [0], [1], [0, 0, 1, 1], [], []>} : vector<32x16xbf16>, vector<16x40xbf16>, vector<32x40xf32> -> vector<32x40xf32>
    %c0_3 = arith.constant 0 : index
    %c0_4 = arith.constant 0 : index
    %4 = vector.load %arg3[%c0_3, %c0_4] : memref<32x40xf32, #tpu.memory_space<vmem>>, vector<32x40xf32>
    tpu.vector_store %arg3[%c0_3, %c0_4], %3 {strides = array<i32>} : memref<32x40xf32, #tpu.memory_space<vmem>>, vector<32x40xf32>,
    return
  }
  func.func @transform_0(%arg0: i32) -> (i32, i32) {
    %c0_i32 = arith.constant 0 : i32
    %c0_i32_0 = arith.constant 0 : i32
    return %arg0, %c0_i32 : i32, i32
  }
  func.func @transform_1(%arg0: i32) -> (i32, i32) {
    %c0_i32 = arith.constant 0 : i32
    %c0_i32_0 = arith.constant 0 : i32
    %c0_i32_1 = arith.constant 0 : i32
    return %c0_i32, %c0_i32_0 : i32, i32
  }
  func.func @transform_2(%arg0: i32) -> (i32, i32) {
    %c0_i32 = arith.constant 0 : i32
    %c0_i32_0 = arith.constant 0 : i32
    return %arg0, %c0_i32 : i32, i32
  }
}

</mosaic_0001>

<llo_original>
// kernel: tpu_custom_call.1
$region0: #{tpu_custom_call.1}
  #allocation0 [shape = 'u32[]', space=smem, size = 0x4, offset = 0x4, fixed_abs, tag = 'smem constant byte address 0x4 - core index']
  #allocation1 [shape = 'u32[144,128]{1,0:T(1,128)}', space=vmem, size = 0x12000, scoped, tag = 'internal scratch']
  %s0 = inlined_call_operand.vmem [shape: f32[128,16], index: 0, kind: input, shape index: {}]
  %s1 = inlined_call_operand.vmem [shape: bf16[16,40], index: 1, kind: input, shape index: {}]
  %s2 = inlined_call_operand.vmem [shape: f32[128,40], index: 2, kind: output, shape index: {}]
  %s3 = sld [smem:[#allocation0]]
  $region41: #{tpu_custom_call.1} parent=0
    _
  %s5 = ssub.s32 1, %s3
  %s6 = scalar_select 0, %s5, %s3
  loop: start=0, step=1, limit=6
  $region2: #{tpu_custom_call.1} parent=0 // loop_pre_header
    _
  $region3: #{tpu_custom_call.1} parent=0 // loop_header
    %s8 = sphi 0, %s12
    %p9 = scmp.ge.s32.totalorder %s8, 6
    %s18 = sphi 0, %s20
    %s21 = sphi 0, %s18
    %s22 = sphi 0, %s21
    %s38 = sphi 0, %s22
    %s42 = sphi 0, %s42
    %s44 = sphi 0, %s42
    %s45 = sphi 0, %s44
    %s59 = sphi 0, %s45
    %s65 = sphi 0, %s67
    %s68 = sphi 0, %s65
    %s69 = sphi 0, %s68
    %s85 = sphi 0, %s69
  $region4: #{tpu_custom_call.1} parent=0 // loop_header_branch
    %11 = sbr.rel (%p9) target = $region8
  $region5: #{tpu_custom_call.1} parent=0 // loop_body
    %s13 = ssub.s32 %s8, 1
    %s14 = ssub.s32 %s8, 2
    %s15 = sadd.s32 %s8, 1
    %s16 = ssub.s32 %s8, %s15
    %p17 = scmp.eq.s32.totalorder %s16, 0
    %s19 = sadd.s32 %s18, 1
    %s20 = scalar_select %p17, %s18, %s19
    %p23 = pneg %p17
    %p24 = scmp.eq.s32.totalorder %s8, 3
    %p25 = por %p23, %p24
    %p26 = scmp.ne.s32.totalorder %s18, %s21
    %p27 = scmp.eq.s32.totalorder %s8, 0
    %p28 = por %p26, %p27
    %p29 = scmp.ne.s32.totalorder %s18, %s21
    %p30 = scmp.eq.s32.totalorder %s13, 3
    %p31 = por %p29, %p30
    %p32 = scmp.ne.s32.totalorder %s21, %s22
    %p33 = scmp.eq.s32.totalorder %s13, 0
    %p34 = por %p32, %p33
    %p35 = scmp.ne.s32.totalorder %s21, %s22
    %p36 = scmp.eq.s32.totalorder %s14, 3
    %p37 = por %p35, %p36
    %p39 = scmp.ne.s32.totalorder %s22, %s38
    %p40 = scmp.eq.s32.totalorder %s14, 0
    %p41 = por %p39, %p40
    %s43 = sadd.s32 %s42, 1
    %p46 = scmp.eq.s32.totalorder %s8, 3
    %p47 = scmp.ne.s32.totalorder %s42, %s44
    %p48 = scmp.eq.s32.totalorder %s8, 0
    %p49 = por %p47, %p48
    %p50 = scmp.ne.s32.totalorder %s42, %s44
    %p51 = scmp.eq.s32.totalorder %s13, 3
    %p52 = por %p50, %p51
    %p53 = scmp.ne.s32.totalorder %s44, %s45
    %p54 = scmp.eq.s32.totalorder %s13, 0
    %p55 = por %p53, %p54
    %p56 = scmp.ne.s32.totalorder %s44, %s45
    %p57 = scmp.eq.s32.totalorder %s14, 3
    %p58 = por %p56, %p57
    %p60 = scmp.ne.s32.totalorder %s45, %s59
    %p61 = scmp.eq.s32.totalorder %s14, 0
    %p62 = por %p60, %p61
    %s63 = ssub.s32 %s8, %s15
    %p64 = scmp.eq.s32.totalorder %s63, 0
    %s66 = sadd.s32 %s65, 1
    %s67 = scalar_select %p64, %s65, %s66
    %p70 = pneg %p64
    %p71 = scmp.eq.s32.totalorder %s8, 3
    %p72 = por %p70, %p71
    %p73 = scmp.ne.s32.totalorder %s65, %s68
    %p74 = scmp.eq.s32.totalorder %s8, 0
    %p75 = por %p73, %p74
    %p76 = scmp.ne.s32.totalorder %s65, %s68
    %p77 = scmp.eq.s32.totalorder %s13, 3
    %p78 = por %p76, %p77
    %p79 = scmp.ne.s32.totalorder %s68, %s69
    %p80 = scmp.eq.s32.totalorder %s13, 0
    %p81 = por %p79, %p80
    %p82 = scmp.ne.s32.totalorder %s68, %s69
    %p83 = scmp.eq.s32.totalorder %s14, 3
    %p84 = por %p82, %p83
    %p86 = scmp.ne.s32.totalorder %s69, %s85
    %p87 = scmp.eq.s32.totalorder %s14, 0
    %p88 = por %p86, %p87
    %p89 = scmp.le.s32.totalorder 1, %s8
    %p90 = scmp.lt.s32.totalorder %s8, 5
    %p91 = pnand %p89, %p90
    %p92 = pneg %p91
    // Predicated region
    $region9: #{tpu_custom_call.1} parent=5 // pred_check
      _
    $region10: #{tpu_custom_call.1} parent=5 // pred_check_branch
      %94 = sbr.rel (%p91) target = $region12
    $region11: #{tpu_custom_call.1} parent=5 // pred_region
      %s95 = ssub.s32 %s8, 1
      // Predicated region
      $region13: #{tpu_custom_call.1} parent=11 // pred_check
        %p96 = pneg %p55
      $region14: #{tpu_custom_call.1} parent=11 // pred_check_branch
        %98 = sbr.rel (%p96) target = $region16
      $region15: #{tpu_custom_call.1} parent=11 // pred_region
        _
      $region16: #{tpu_custom_call.1} parent=11 // pred_fallthru
        _
    $region12: #{tpu_custom_call.1} parent=5 // pred_fallthru
      _
    %p99 = scmp.lt.s32.totalorder %s8, 4
    // Predicated region
    $region17: #{tpu_custom_call.1} parent=5 // pred_check
      %p100 = pneg %p99
    $region18: #{tpu_custom_call.1} parent=5 // pred_check_branch
      %102 = sbr.rel (%p100) target = $region20
    $region19: #{tpu_custom_call.1} parent=5 // pred_region
      // Predicated region
      $region21: #{tpu_custom_call.1} parent=19 // pred_check
        %p103 = pneg %p28
      $region22: #{tpu_custom_call.1} parent=19 // pred_check_branch
        %105 = sbr.rel (%p103) target = $region24
      $region23: #{tpu_custom_call.1} parent=19 // pred_region
        %s106 = smul.u32 4, %s8
        %p107 = scmp.lt.s32.totalorder %s106, 15
        %s108 = scalar_select %p107, %s106, 15
        %s109 = smul.addr %s108, 8
        %s110 = scalar_lea.vmem %s0, %s109
        %s111 = smul.u32 4, %s8
      $region24: #{tpu_custom_call.1} parent=19 // pred_fallthru
        _
    $region20: #{tpu_custom_call.1} parent=5 // pred_fallthru
      _
    %p112 = scmp.le.s32.totalorder 1, %s8
    %p113 = scmp.lt.s32.totalorder %s8, 5
    %p114 = pnand %p112, %p113
    %p115 = pneg %p114
    // Predicated region
    $region25: #{tpu_custom_call.1} parent=5 // pred_check
      _
    $region26: #{tpu_custom_call.1} parent=5 // pred_check_branch
      %117 = sbr.rel (%p114) target = $region28
    $region27: #{tpu_custom_call.1} parent=5 // pred_region
      %s118 = ssub.s32 %s8, 1
      %s119 = smul.u32 4, %s13
      %p120 = scmp.lt.s32.totalorder %s119, 15
      %s121 = scalar_select %p120, %s119, 15
      %s122 = smul.addr %s121, 8
      %s123 = scalar_lea.vmem %s0, %s122
      %p124 = pneg %p34
      %p125 = pneg %p31
      %p126 = pneg %p55
      %p127 = pneg %p52
      %p128 = pneg %p81
      %p129 = pneg %p78
      %s130 = smul.u32 4, %s13
      %p131 = scmp.lt.s32.totalorder %s130, 15
      %s132 = scalar_select %p131, %s130, 15
      %s133 = smul.addr %s132, 8
      %s134 = scalar_lea.vmem %s2, %s133
      %s135 = smul.u32 4, %s13
      %p136 = scmp.lt.s32.totalorder %s135, 15
      %s137 = scalar_select %p136, %s135, 15
      %s138 = smul.addr %s137, 8
      %s139 = scalar_lea.vmem %s0, %s138
      %s140 = smul.u32 4, %s13
      %s141 = smul.u32 4, %s13
      %p142 = scmp.lt.s32.totalorder %s141, 15
      %s143 = scalar_select %p142, %s141, 15
      %s144 = smul.addr %s143, 8
      %s145 = scalar_lea.vmem %s2, %s144
      %s146 = smul.u32 4, %s13
      %v148 = vld [vmem:[%s139] sm:$0xff]
      %v149 = vld [vmem:[%s139 + $0x8] sm:$0xff]
      %v150 = vld [vmem:[%s139 + $0x10] sm:$0xff]
      %v151 = vld [vmem:[%s139 + $0x18] sm:$0xff]
      %v152 = vpack.c.bf16 %v149, %v148
      %v153 = vpack.c.bf16 %v151, %v150
      %v154 = vld [vmem:[%s1] sm:$0xf]
      %v155 = vld [vmem:[%s1 + $0x4] sm:$0xf]
      %v158 = vunpack.c.l.b16 %v154
      %v159 = vunpack.c.l.b16 %v155
      %v160 = vpack.c.b16 %v159, %v158
      %vm162 = vcmask 130048
      %v164 = vsel %vm162, %v152, 0
      %v167 = vsel %vm162, %v153, 0
      %169 = vmatprep.subr.bf16.mxu0 0
      %170 = vmatpush1.bf16.msra.mxu0 %v160
      %171 = vmatprep.subr.bf16.mxu0 0
      %172 = vmatpush1.bf16.msra.mxu0 0
      %173 = vmatprep.subr.bf16.mxu0 0
      %174 = vmatpush1.bf16.msra.mxu0 0
      %175 = vmatprep.subr.bf16.mxu0 0
      %176 = vmatpush1.bf16.msra.mxu0 0
      %177 = vmatprep.subr.bf16.mxu0 0
      %178 = vmatpush1.bf16.msra.mxu0 0
      %179 = vmatprep.subr.bf16.mxu0 0
      %180 = vmatpush1.bf16.msra.mxu0 0
      %181 = vmatprep.subr.bf16.mxu0 0
      %182 = vmatpush1.bf16.msra.mxu0 0
      %183 = vmatprep.subr.bf16.mxu0 0
      %184 = vmatpush1.bf16.msra.mxu0 0
      %185 = vmatprep.subr.bf16.mxu0 0
      %186 = vmatpush1.bf16.msra.mxu0 0
      %187 = vmatprep.subr.bf16.mxu0 0
      %188 = vmatpush1.bf16.msra.mxu0 0
      %189 = vmatprep.subr.bf16.mxu0 0
      %190 = vmatpush1.bf16.msra.mxu0 0
      %191 = vmatprep.subr.bf16.mxu0 0
      %192 = vmatpush1.bf16.msra.mxu0 0
      %193 = vmatprep.subr.bf16.mxu0 0
      %194 = vmatpush1.bf16.msra.mxu0 0
      %195 = vmatprep.subr.bf16.mxu0 0
      %196 = vmatpush1.bf16.msra.mxu0 0
      %197 = vmatprep.subr.bf16.mxu0 0
      %198 = vmatpush1.bf16.msra.mxu0 0
      %199 = vmatprep.subr.bf16.mxu0 0
      %200 = vmatpush1.bf16.msra.mxu0 0
      %201 = vmatprep.mubr.bf16.mxu0 0
      %202 = vmatmul.mubr.bf16.gmra.mrb[0].mxu0 %v164
      %v203 = vpop.f32.mrb[0].mxu0
      %v204 = vadd.f32 0.0, %v203
      %v205 = vpop.f32.mrb[0].mxu0
      %v206 = vpop.f32.mrb[0].mxu0
      %v207 = vadd.f32 0.0, %v206
      %v208 = vpop.f32.mrb[0].mxu0
      %209 = vmatprep.mubr.bf16.mxu0 0
      %210 = vmatmul.mubr.bf16.gmra.mrb[0].mxu0 %v167
      %v211 = vpop.f32.mrb[0].mxu0
      %v212 = vadd.f32 0.0, %v211
      %v213 = vpop.f32.mrb[0].mxu0
      %v214 = vpop.f32.mrb[0].mxu0
      %v215 = vadd.f32 0.0, %v214
      %v216 = vpop.f32.mrb[0].mxu0
      %217 = vdwg.mxu0
      %vm218 = vcmask 326656
      %219 = vst.msk [vmem:[%s145] sm:$0xff] %vm218, %v204
      %220 = vst.msk [vmem:[%s145 + $0x8] sm:$0xff] %vm218, %v207
      %221 = vst.msk [vmem:[%s145 + $0x10] sm:$0xff] %vm218, %v212
      %222 = vst.msk [vmem:[%s145 + $0x18] sm:$0xff] %vm218, %v215
      %s223 = smul.u32 4, %s13
      %p224 = scmp.lt.s32.totalorder %s223, 15
      %s225 = scalar_select %p224, %s223, 15
      %s226 = smul.addr %s225, 8
      %s227 = scalar_lea.vmem %s2, %s226
      // Predicated region
      $region29: #{tpu_custom_call.1} parent=27 // pred_check
        %p228 = pneg %p78
      $region30: #{tpu_custom_call.1} parent=27 // pred_check_branch
        %230 = sbr.rel (%p228) target = $region32
      $region31: #{tpu_custom_call.1} parent=27 // pred_region
        %s231 = smul.u32 4, %s13
      $region32: #{tpu_custom_call.1} parent=27 // pred_fallthru
        _
    $region28: #{tpu_custom_call.1} parent=5 // pred_fallthru
      _
    %p232 = scmp.le.s32.totalorder 2, %s8
    // Predicated region
    $region33: #{tpu_custom_call.1} parent=5 // pred_check
      %p233 = pneg %p232
    $region34: #{tpu_custom_call.1} parent=5 // pred_check_branch
      %235 = sbr.rel (%p233) target = $region36
    $region35: #{tpu_custom_call.1} parent=5 // pred_region
      %s236 = ssub.s32 %s8, 2
      // Predicated region
      $region37: #{tpu_custom_call.1} parent=35 // pred_check
        %p237 = pneg %p84
      $region38: #{tpu_custom_call.1} parent=35 // pred_check_branch
        %239 = sbr.rel (%p237) target = $region40
      $region39: #{tpu_custom_call.1} parent=35 // pred_region
        %s240 = smul.u32 4, %s14
        %p241 = scmp.lt.s32.totalorder %s240, 15
        %s242 = scalar_select %p241, %s240, 15
        %s243 = smul.addr %s242, 8
        %s244 = scalar_lea.vmem %s2, %s243
      $region40: #{tpu_custom_call.1} parent=35 // pred_fallthru
        _
    $region36: #{tpu_custom_call.1} parent=5 // pred_fallthru
      _
  $region6: #{tpu_custom_call.1} parent=0 // loop_footer
    %s12 = sadd.s32 1, %s8
  $region7: #{tpu_custom_call.1} parent=0 // loop_footer_branch
    %7 = sbr.rel target = $region3
  $region8: #{tpu_custom_call.1} parent=0 // loop_exit
    _

</llo_original>
